<compile_context>
chip_gen: v5e
topology: v5e:2x2
jax: 0.10.0
libtpu: 0.0.40
codegen_flags: <defaults>
</compile_context>

<pallas_src>
import functools

import jax
import jax.numpy as jnp
from jax.experimental import pallas as pl
from jax.experimental.pallas import tpu as pltpu


# ----------------------------------------------------------------------------
# Small helpers
# ----------------------------------------------------------------------------
def _vmem_capacity_bytes():
    """Physical VMEM of the current TPU generation (conservative fallback)."""
    try:
        info = pltpu.get_tpu_info()
        cap = getattr(info, "vmem_capacity_bytes", None)
        if cap:
            return int(cap)
    except Exception:
        pass
    return 64 * 1024 * 1024          # v7x-conservative default


def _per_row_bytes(W, Cin, Cout, itemsize, fre, apply_conv2):
    """VMEM bytes consumed per image row (W lanes) of a spatial tile."""
    b = 2 * Cin * W * itemsize                   # x tile, double-buffered
    if apply_conv2:
        b += 2 * Cout * W * itemsize             # feat out tile, double-buffered
    b += 2 * Cout * W * 4                        # f32 feat + one live temp
    if fre:
        b += Cout * W * 4                        # extra live f32 diff/square temp
        if W > 1:
            b += 2 * W * 4                       # (1, tile) mask, double-buffered
    return b


def _choose_tile_rows(H, W, per_row, budget_bytes):
    """Largest row count th s.t. H % th == 0, (th*W) % 128 == 0 and the tile
    working set fits the generation-aware VMEM budget."""
    aligned = [th for th in range(1, H + 1)
               if H % th == 0 and (th * W) % 128 == 0]
    fitting = [th for th in aligned if th * per_row <= budget_bytes]
    if fitting:
        return max(fitting)
    if aligned:
        return min(aligned)          # smallest aligned tile; may exceed budget
    # TODO(synk): no aligned tiling exists (H*W not a 128 multiple along any
    # divisor of H): fall back to one whole image per grid step.  For very
    # large unaligned images this can exceed VMEM, notably on 64 MiB v7x parts.
    return H


def _acc_add(acc_ref, vals):
    """Accumulate a lane-wise partial sum of `vals` (C, Tv) into the (C, 128)
    f32 scratch `acc_ref`.  When Tv is a multiple of 128 (and the unroll stays
    small) this is pure VALU vreg adds; otherwise it falls back to a single
    in-tile lane reduce added into lane 0."""
    Tv = vals.shape[-1]
    if Tv % 128 == 0 and (Tv // 128) <= 64:
        p = vals[:, 0:128]
        for k in range(1, Tv // 128):
            p = p + vals[:, k * 128:(k + 1) * 128]
        acc_ref[...] = acc_ref[...] + p
    else:
        acc_ref[:, 0:1] = acc_ref[:, 0:1] + jnp.sum(vals, axis=-1, keepdims=True)


# ----------------------------------------------------------------------------
# Kernel
# ----------------------------------------------------------------------------
def _channel_att_kernel(*refs, H, W, th, fre, apply_conv2, multi_tile):
    """Per-(batch, spatial-tile) kernel.

    Ref order (batch dim squeezed out of every per-batch block):
      inputs : x (Cin, T), [w2 (Cout,Cin), b2 (Cout,1)] if apply_conv2,
               w1t (Cout,Cout), b1 (1,Cout), [wmask (1,T)] if fre and W>1
      outputs: [feat (Cout, T)] if apply_conv2, atten (1, Cout)
      scratch: fre -> h_acc (Cout,128), w_acc (Cout,128), [prev_row (Cout,W)]
               else -> m_acc (Cout,128)
    """
    idx = 0
    x_ref = refs[idx]; idx += 1
    if apply_conv2:
        w2_ref, b2_ref = refs[idx], refs[idx + 1]; idx += 2
    w1t_ref, b1_ref = refs[idx], refs[idx + 1]; idx += 2
    if fre and W > 1:
        wmask_ref = refs[idx]; idx += 1
    if apply_conv2:
        feat_ref = refs[idx]; idx += 1
    atten_ref = refs[idx]; idx += 1
    if fre:
        h_acc, w_acc = refs[idx], refs[idx + 1]; idx += 2
        prev_row = refs[idx] if multi_tile else None
    else:
        m_acc = refs[idx]

    s = pl.program_id(1)
    ns = pl.num_programs(1)
    T = x_ref.shape[-1]                     # lanes in this spatial tile (= th*W)

    x = x_ref[...]

    # ---- conv2_1x1 on the MXU (only when Cin != Cout) ------------------------
    if apply_conv2:
        feat = jnp.dot(w2_ref[...].astype(jnp.float32),
                       x.astype(jnp.float32),
                       preferred_element_type=jnp.float32)
        feat = feat + b2_ref[...].astype(jnp.float32)
        feat_ref[...] = feat.astype(feat_ref.dtype)      # lane-dense store
    else:
        # Identity passthrough: feat output not emitted (wrapper returns x).
        feat = x.astype(jnp.float32)

    # ---- attention statistic finalize (once per image) -----------------------
    def _finish(stat_col):
        # conv_1x1 on the (Cout,1) statistic: out[o] = sum_i w1[o,i]*stat[i]+b1[o]
        prod = w1t_ref[...].astype(jnp.float32) * stat_col        # (Cout, Cout)
        atten = jnp.sum(prod, axis=0, keepdims=True) \
            + b1_ref[...].astype(jnp.float32)                     # (1, Cout)
        atten_ref[...] = atten.astype(atten_ref.dtype)

    if fre:
        @pl.when(s == 0)
        def _():
            h_acc[...] = jnp.zeros_like(h_acc)
            w_acc[...] = jnp.zeros_like(w_acc)

        # Vertical TV term crossing the tile boundary (previous tile's last row).
        if multi_tile:
            @pl.when(s > 0)
            def _():
                bd = feat[:, :W] - prev_row[...]
                _acc_add(h_acc, bd * bd)

        # Vertical diffs fully inside this tile: lanes offset by W.
        if th > 1:
            dh = feat[:, W:] - feat[:, :T - W]
            _acc_add(h_acc, dh * dh)

        # Horizontal diffs: adjacent lanes, row-wrap positions zeroed by the
        # host-precomputed mask (no iota/mod/select in the kernel).
        if W > 1:
            dw = feat[:, 1:] - feat[:, :T - 1]
            m = wmask_ref[...][:, :T - 1]
            _acc_add(w_acc, dw * dw * m)

        # Carry this tile's last image row for the next tile's boundary term.
        if multi_tile:
            @pl.when(s < ns - 1)
            def _():
                prev_row[...] = feat[:, T - W:]

        @pl.when(s == ns - 1)
        def _():
            # NOTE: for H == 1 / W == 1 the empty TV term contributes 0 here,
            # whereas PyTorch's mean over an empty dim would produce NaN.
            inv_h = (1.0 / ((H - 1) * W)) if H > 1 else 0.0
            inv_w = (1.0 / (H * (W - 1))) if W > 1 else 0.0
            stat = (jnp.sum(h_acc[...], axis=-1, keepdims=True) * inv_h
                    + jnp.sum(w_acc[...], axis=-1, keepdims=True) * inv_w)
            _finish(stat)
    else:
        @pl.when(s == 0)
        def _():
            m_acc[...] = jnp.zeros_like(m_acc)

        _acc_add(m_acc, feat)

        @pl.when(s == ns - 1)
        def _():
            _finish(jnp.sum(m_acc[...], axis=-1, keepdims=True) * (1.0 / (H * W)))


# ----------------------------------------------------------------------------
# Wrapper
# ----------------------------------------------------------------------------
def channel_att_forward(x_nchw, w2, b2, w1, b1, fre=True, tile_rows=None):
    """Pallas implementation of ChannelAtt.forward (NCHW in, NCHW out).

    x_nchw: (B, Cin, H, W)
    w2: (Cout, Cin)  conv2_1x1 weight (1x1 kernel squeezed), b2: (Cout,)
    w1: (Cout, Cout) conv_1x1 weight (1x1 kernel squeezed),  b1: (Cout,)
    Returns: feat (B, Cout, H, W), atten (B, Cout, 1, 1)
    """
    B, Cin, H, W = x_nchw.shape
    Cout = w1.shape[0]
    apply_conv2 = (Cin != Cout)
    itemsize = jnp.dtype(x_nchw.dtype).itemsize

    # Generation-aware VMEM budget (v7x: 64 MiB physical; v5e/v6e: 128 MiB).
    vmem_cap = _vmem_capacity_bytes()
    vmem_limit = max(min(int(vmem_cap * 0.75), 100 * 1024 * 1024), 16 * 1024 * 1024)
    tile_budget = vmem_limit // 2

    per_row = _per_row_bytes(W, Cin, Cout, itemsize, fre, apply_conv2)

    if tile_rows is not None:
        th = int(tile_rows)
        if not (1 <= th <= H and H % th == 0
                and ((th * W) % 128 == 0 or th == H)):
            th = _choose_tile_rows(H, W, per_row, tile_budget)
    else:
        th = _choose_tile_rows(H, W, per_row, tile_budget)
    tile_hw = th * W
    n_spatial = H // th
    multi_tile = n_spatial > 1

    x_flat = x_nchw.reshape(B, Cin, H * W)           # free reshape, NCHW kept
    w1t = jnp.transpose(w1)                          # (Cout_in, Cout_out), tiny
    b1_row = b1.reshape(1, Cout)

    in_specs, args = [], []
    in_specs.append(pl.BlockSpec((None, Cin, tile_hw), lambda b, s: (b, 0, s)))
    args.append(x_flat)
    if apply_conv2:
        in_specs.append(pl.BlockSpec((Cout, Cin), lambda b, s: (0, 0)))
        args.append(w2)
        in_specs.append(pl.BlockSpec((Cout, 1), lambda b, s: (0, 0)))
        args.append(b2.reshape(Cout, 1))
    in_specs.append(pl.BlockSpec((Cout, Cout), lambda b, s: (0, 0)))
    args.append(w1t)
    in_specs.append(pl.BlockSpec((1, Cout), lambda b, s: (0, 0)))
    args.append(b1_row)
    if fre and W > 1:
        col = jnp.arange(tile_hw, dtype=jnp.int32)
        wmask = ((col % W) != (W - 1)).astype(jnp.float32).reshape(1, tile_hw)
        in_specs.append(pl.BlockSpec((1, tile_hw), lambda b, s: (0, 0)))
        args.append(wmask)

    out_shapes, out_specs = [], []
    if apply_conv2:
        out_shapes.append(jax.ShapeDtypeStruct((B, Cout, H * W), x_nchw.dtype))
        out_specs.append(pl.BlockSpec((None, Cout, tile_hw), lambda b, s: (b, 0, s)))
    out_shapes.append(jax.ShapeDtypeStruct((B, 1, Cout), x_nchw.dtype))
    out_specs.append(pl.BlockSpec((None, 1, Cout), lambda b, s: (b, 0, 0)))

    if fre:
        scratch = [pltpu.VMEM((Cout, 128), jnp.float32),
                   pltpu.VMEM((Cout, 128), jnp.float32)]
        if multi_tile:
            scratch.append(pltpu.VMEM((Cout, W), jnp.float32))
    else:
        scratch = [pltpu.VMEM((Cout, 128), jnp.float32)]

    kernel = functools.partial(_channel_att_kernel, H=H, W=W, th=th, fre=fre,
                               apply_conv2=apply_conv2, multi_tile=multi_tile)

    outs = pl.pallas_call(
        kernel,
        out_shape=tuple(out_shapes),
        grid_spec=pltpu.PrefetchScalarGridSpec(
            num_scalar_prefetch=0,
            grid=(B, n_spatial),
            in_specs=in_specs,
            out_specs=tuple(out_specs),
            scratch_shapes=scratch),
        compiler_params=pltpu.CompilerParams(
            dimension_semantics=("parallel", "arbitrary"),
            vmem_limit_bytes=vmem_limit),
    )(*args)

    if apply_conv2:
        feat_flat, atten_row = outs
        feat_nchw = feat_flat.reshape(B, Cout, H, W)
    else:
        atten_row = outs[0]
        feat_nchw = x_nchw                 # identity passthrough, no HBM copy
    atten = atten_row.reshape(B, Cout, 1, 1)
    return feat_nchw, atten


# ----------------------------------------------------------------------------
# Pure-JAX reference (InspiredAtt = identity), full f32 precision.
# ----------------------------------------------------------------------------
def channel_att_reference(x_nchw, w2, b2, w1, b1, fre=True):
    B, Cin, H, W = x_nchw.shape
    Cout = w1.shape[0]
    feat = x_nchw
    if Cin != Cout:
        feat = jnp.einsum('bihw,oi->bohw', feat, w2, precision='highest') \
            + b2.reshape(1, Cout, 1, 1)
    if fre:
        h_tv = (feat[..., 1:, :] - feat[..., :-1, :]) ** 2
        w_tv = (feat[..., 1:] - feat[..., :-1]) ** 2
        atten = (jnp.mean(h_tv, axis=(2, 3), keepdims=True)
                 + jnp.mean(w_tv, axis=(2, 3), keepdims=True))
    else:
        atten = jnp.mean(feat, axis=(2, 3), keepdims=True)
    atten = jnp.einsum('bihw,oi->bohw', atten, w1, precision='highest') \
        + b1.reshape(1, Cout, 1, 1)
    return feat, atten


if __name__ == "__main__":
    B, Cin, Cout, H, W = 2, 4, 8, 16, 16

    key = jax.random.PRNGKey(0)
    kx, kx2, kw2, kb2, kw1, kb1 = jax.random.split(key, 6)

    x = jax.random.normal(kx, (B, Cin, H, W), dtype=jnp.float32)

    bound2 = 1.0 / (Cin ** 0.5)
    w2 = jax.random.uniform(kw2, (Cout, Cin), minval=-bound2, maxval=bound2,
                            dtype=jnp.float32)
    b2 = jax.random.uniform(kb2, (Cout,), minval=-bound2, maxval=bound2,
                            dtype=jnp.float32)
    bound1 = 1.0 / (Cout ** 0.5)
    w1 = jax.random.uniform(kw1, (Cout, Cout), minval=-bound1, maxval=bound1,
                            dtype=jnp.float32)
    b1 = jax.random.uniform(kb1, (Cout,), minval=-bound1, maxval=bound1,
                            dtype=jnp.float32)

    # Tolerances absorb possible reduced-pass f32 MXU matmul in the kernel's
    # conv2_1x1 (the reference runs at precision='highest'); real indexing /
    # layout bugs produce O(1) errors and are still caught.
    RTOL, ATOL = 5e-3, 5e-3

    # 1) fre=True with conv2_1x1 and two spatial tiles per image (exercises the
    #    cross-tile vertical-TV carry and the masked horizontal-TV path).
    feat, atten = channel_att_forward(x, w2, b2, w1, b1, fre=True, tile_rows=8)
    jax.block_until_ready((feat, atten))
    feat_ref, atten_ref = channel_att_reference(x, w2, b2, w1, b1, fre=True)
    assert feat.shape == (B, Cout, H, W)
    assert atten.shape == (B, Cout, 1, 1)
    assert jnp.allclose(feat, feat_ref, rtol=RTOL, atol=ATOL)
    assert jnp.allclose(atten, atten_ref, rtol=RTOL, atol=ATOL)

    # 2) fre=False (global-mean attention).
    feat2, atten2 = channel_att_forward(x, w2, b2, w1, b1, fre=False, tile_rows=8)
    jax.block_until_ready((feat2, atten2))
    feat2_ref, atten2_ref = channel_att_reference(x, w2, b2, w1, b1, fre=False)
    assert jnp.allclose(feat2, feat2_ref, rtol=RTOL, atol=ATOL)
    assert jnp.allclose(atten2, atten2_ref, rtol=RTOL, atol=ATOL)

    # 3) in_channels == out_channels: conv2_1x1 skipped, feat is the identity
    #    passthrough (kernel only emits atten), auto (VMEM-budget) tile sizing.
    x_id = jax.random.normal(kx2, (B, Cout, H, W), dtype=jnp.float32)
    feat3, atten3 = channel_att_forward(x_id, w2, b2, w1, b1, fre=True)
    jax.block_until_ready((feat3, atten3))
    feat3_ref, atten3_ref = channel_att_reference(x_id, w2, b2, w1, b1, fre=True)
    assert jnp.allclose(feat3, feat3_ref, rtol=1e-4, atol=1e-5)
    assert jnp.allclose(atten3, atten3_ref, rtol=1e-4, atol=1e-5)

    print("KERNEL_OK")
</pallas_src>

<mosaic_0001>
module attributes {stable_mosaic.version = 11 : i64} {
  func.func @_channel_att_kernel(%arg0: i32, %arg1: i32, %arg2: memref<1x4x128xf32, #tpu.memory_space<vmem>>, %arg3: memref<8x4xf32, #tpu.memory_space<vmem>>, %arg4: memref<8x1xf32, #tpu.memory_space<vmem>>, %arg5: memref<8x8xf32, #tpu.memory_space<vmem>>, %arg6: memref<1x8xf32, #tpu.memory_space<vmem>>, %arg7: memref<1x128xf32, #tpu.memory_space<vmem>>, %arg8: memref<1x8x128xf32, #tpu.memory_space<vmem>>, %arg9: memref<1x1x8xf32, #tpu.memory_space<vmem>>, %arg10: memref<8x128xf32, #tpu.memory_space<vmem>>, %arg11: memref<8x128xf32, #tpu.memory_space<vmem>>, %arg12: memref<8x16xf32, #tpu.memory_space<vmem>>) attributes {dimension_semantics = [#tpu.dimension_semantics<parallel>, #tpu.dimension_semantics<arbitrary>], iteration_bounds = array<i64: 2, 2>, scalar_prefetch = 0 : i64, scratch_operands = 3 : i64, tpu.core_type = #tpu.core_type<tc>, window_params = [{transform_indices = @transform_0, window_bounds = array<i64: 1, 4, 128>}, {pipeline_mode = #tpu.pipeline_mode<synchronous>, transform_indices = @transform_1, window_bounds = array<i64: 8, 4>}, {pipeline_mode = #tpu.pipeline_mode<synchronous>, transform_indices = @transform_2, window_bounds = array<i64: 8, 1>}, {pipeline_mode = #tpu.pipeline_mode<synchronous>, transform_indices = @transform_3, window_bounds = array<i64: 8, 8>}, {pipeline_mode = #tpu.pipeline_mode<synchronous>, transform_indices = @transform_4, window_bounds = array<i64: 1, 8>}, {pipeline_mode = #tpu.pipeline_mode<synchronous>, transform_indices = @transform_5, window_bounds = array<i64: 1, 128>}, {transform_indices = @transform_6, window_bounds = array<i64: 1, 8, 128>}, {transform_indices = @transform_7, window_bounds = array<i64: 1, 1, 8>}]} {
    %c0 = arith.constant 0 : index
    %c0_0 = arith.constant 0 : index
    %c0_1 = arith.constant 0 : index
    %0 = vector.load %arg2[%c0, %c0_0, %c0_1] : memref<1x4x128xf32, #tpu.memory_space<vmem>>, vector<1x4x128xf32>
    %1 = vector.shape_cast %0 : vector<1x4x128xf32> to vector<4x128xf32>
    %c0_2 = arith.constant 0 : index
    %c0_3 = arith.constant 0 : index
    %2 = vector.load %arg3[%c0_2, %c0_3] : memref<8x4xf32, #tpu.memory_space<vmem>>, vector<8x4xf32>
    %cst = arith.constant dense<0.000000e+00> : vector<8x128xf32>
    %3 = tpu.matmul %2, %1, %cst {dimension_numbers = #tpu.dot_dimension_numbers<[1], [0], [0], [1], [0, 0, 1, 1], [], []>} : vector<8x4xf32>, vector<4x128xf32>, vector<8x128xf32> -> vector<8x128xf32>
    %c0_4 = arith.constant 0 : index
    %c0_5 = arith.constant 0 : index
    %4 = vector.load %arg4[%c0_4, %c0_5] : memref<8x1xf32, #tpu.memory_space<vmem>>, vector<8x1xf32>
    %5 = vector.broadcast %4 : vector<8x1xf32> to vector<8x128xf32>
    %6 = arith.addf %3, %5 : vector<8x128xf32>
    %c0_6 = arith.constant 0 : index
    %c0_7 = arith.constant 0 : index
    %c0_8 = arith.constant 0 : index
    %7 = vector.load %arg8[%c0_6, %c0_7, %c0_8] : memref<1x8x128xf32, #tpu.memory_space<vmem>>, vector<1x8x128xf32>
    %8 = vector.shape_cast %7 : vector<1x8x128xf32> to vector<8x128xf32>
    %9 = vector.shape_cast %6 : vector<8x128xf32> to vector<1x8x128xf32>
    tpu.vector_store %arg8[%c0_6, %c0_7, %c0_8], %9 {strides = array<i32>} : memref<1x8x128xf32, #tpu.memory_space<vmem>>, vector<1x8x128xf32>,
    %c0_i32 = arith.constant 0 : i32
    %10 = arith.cmpi eq, %arg1, %c0_i32 : i32
    %11 = arith.extui %10 : i1 to i32
    %c0_i32_9 = arith.constant 0 : i32
    %12 = arith.cmpi ne, %11, %c0_i32_9 : i32
    scf.if %12 {
      %cst_27 = arith.constant 0.000000e+00 : f32
      %44 = vector.broadcast %cst_27 : f32 to vector<8x128xf32>
      %c0_28 = arith.constant 0 : index
      %c0_29 = arith.constant 0 : index
      %45 = vector.load %arg10[%c0_28, %c0_29] : memref<8x128xf32, #tpu.memory_space<vmem>>, vector<8x128xf32>
      tpu.vector_store %arg10[%c0_28, %c0_29], %44 {strides = array<i32>} : memref<8x128xf32, #tpu.memory_space<vmem>>, vector<8x128xf32>,
      %cst_30 = arith.constant 0.000000e+00 : f32
      %46 = vector.broadcast %cst_30 : f32 to vector<8x128xf32>
      %c0_31 = arith.constant 0 : index
      %c0_32 = arith.constant 0 : index
      %47 = vector.load %arg11[%c0_31, %c0_32] : memref<8x128xf32, #tpu.memory_space<vmem>>, vector<8x128xf32>
      tpu.vector_store %arg11[%c0_31, %c0_32], %46 {strides = array<i32>} : memref<8x128xf32, #tpu.memory_space<vmem>>, vector<8x128xf32>,
    } else {
    }
    %c0_i32_10 = arith.constant 0 : i32
    %13 = arith.cmpi sgt, %arg1, %c0_i32_10 : i32
    %14 = arith.extui %13 : i1 to i32
    %c0_i32_11 = arith.constant 0 : i32
    %15 = arith.cmpi ne, %14, %c0_i32_11 : i32
    scf.if %15 {
      %44 = vector.extract_strided_slice %6 {offsets = [0, 0], sizes = [8, 16], strides = [1, 1]} : vector<8x128xf32> to vector<8x16xf32>
      %c0_27 = arith.constant 0 : index
      %c0_28 = arith.constant 0 : index
      %45 = vector.load %arg12[%c0_27, %c0_28] : memref<8x16xf32, #tpu.memory_space<vmem>>, vector<8x16xf32>
      %46 = arith.subf %44, %45 : vector<8x16xf32>
      %47 = arith.mulf %46, %46 : vector<8x16xf32>
      %c0_29 = arith.constant 0 : index
      %c0_30 = arith.constant 0 : index
      %48 = vector.load %arg10[%c0_29, %c0_30] : memref<8x128xf32, #tpu.memory_space<vmem>>, vector<8x1xf32>
      %cst_31 = arith.constant dense<0.000000e+00> : vector<8xf32>
      %49 = vector.multi_reduction <add>, %47, %cst_31 [1] : vector<8x16xf32> to vector<8xf32>
      %50 = vector.shape_cast %49 : vector<8xf32> to vector<8x1xf32>
      %51 = arith.addf %48, %50 : vector<8x1xf32>
      %c0_32 = arith.constant 0 : index
      %c0_33 = arith.constant 0 : index
      %52 = vector.load %arg10[%c0_32, %c0_33] : memref<8x128xf32, #tpu.memory_space<vmem>>, vector<8x1xf32>
      tpu.vector_store %arg10[%c0_32, %c0_33], %51 {strides = array<i32>} : memref<8x128xf32, #tpu.memory_space<vmem>>, vector<8x1xf32>,
    } else {
    }
    %16 = vector.extract_strided_slice %6 {offsets = [0, 16], sizes = [8, 112], strides = [1, 1]} : vector<8x128xf32> to vector<8x112xf32>
    %17 = vector.extract_strided_slice %6 {offsets = [0, 0], sizes = [8, 112], strides = [1, 1]} : vector<8x128xf32> to vector<8x112xf32>
    %18 = arith.subf %16, %17 : vector<8x112xf32>
    %19 = arith.mulf %18, %18 : vector<8x112xf32>
    %c0_12 = arith.constant 0 : index
    %c0_13 = arith.constant 0 : index
    %20 = vector.load %arg10[%c0_12, %c0_13] : memref<8x128xf32, #tpu.memory_space<vmem>>, vector<8x1xf32>
    %cst_14 = arith.constant dense<0.000000e+00> : vector<8xf32>
    %21 = vector.multi_reduction <add>, %19, %cst_14 [1] : vector<8x112xf32> to vector<8xf32>
    %22 = vector.shape_cast %21 : vector<8xf32> to vector<8x1xf32>
    %23 = arith.addf %20, %22 : vector<8x1xf32>
    %c0_15 = arith.constant 0 : index
    %c0_16 = arith.constant 0 : index
    %24 = vector.load %arg10[%c0_15, %c0_16] : memref<8x128xf32, #tpu.memory_space<vmem>>, vector<8x1xf32>
    tpu.vector_store %arg10[%c0_15, %c0_16], %23 {strides = array<i32>} : memref<8x128xf32, #tpu.memory_space<vmem>>, vector<8x1xf32>,
    %25 = vector.extract_strided_slice %6 {offsets = [0, 1], sizes = [8, 127], strides = [1, 1]} : vector<8x128xf32> to vector<8x127xf32>
    %26 = vector.extract_strided_slice %6 {offsets = [0, 0], sizes = [8, 127], strides = [1, 1]} : vector<8x128xf32> to vector<8x127xf32>
    %27 = arith.subf %25, %26 : vector<8x127xf32>
    %c0_17 = arith.constant 0 : index
    %c0_18 = arith.constant 0 : index
    %28 = vector.load %arg7[%c0_17, %c0_18] : memref<1x128xf32, #tpu.memory_space<vmem>>, vector<1x128xf32>
    %29 = vector.extract_strided_slice %28 {offsets = [0, 0], sizes = [1, 127], strides = [1, 1]} : vector<1x128xf32> to vector<1x127xf32>
    %30 = arith.mulf %27, %27 : vector<8x127xf32>
    %31 = vector.broadcast %29 : vector<1x127xf32> to vector<8x127xf32>
    %32 = arith.mulf %30, %31 : vector<8x127xf32>
    %c0_19 = arith.constant 0 : index
    %c0_20 = arith.constant 0 : index
    %33 = vector.load %arg11[%c0_19, %c0_20] : memref<8x128xf32, #tpu.memory_space<vmem>>, vector<8x1xf32>
    %cst_21 = arith.constant dense<0.000000e+00> : vector<8xf32>
    %34 = vector.multi_reduction <add>, %32, %cst_21 [1] : vector<8x127xf32> to vector<8xf32>
    %35 = vector.shape_cast %34 : vector<8xf32> to vector<8x1xf32>
    %36 = arith.addf %33, %35 : vector<8x1xf32>
    %c0_22 = arith.constant 0 : index
    %c0_23 = arith.constant 0 : index
    %37 = vector.load %arg11[%c0_22, %c0_23] : memref<8x128xf32, #tpu.memory_space<vmem>>, vector<8x1xf32>
    tpu.vector_store %arg11[%c0_22, %c0_23], %36 {strides = array<i32>} : memref<8x128xf32, #tpu.memory_space<vmem>>, vector<8x1xf32>,
    %c1_i32 = arith.constant 1 : i32
    %38 = arith.cmpi slt, %arg1, %c1_i32 : i32
    %39 = arith.extui %38 : i1 to i32
    %c0_i32_24 = arith.constant 0 : i32
    %40 = arith.cmpi ne, %39, %c0_i32_24 : i32
    scf.if %40 {
      %44 = vector.extract_strided_slice %6 {offsets = [0, 112], sizes = [8, 16], strides = [1, 1]} : vector<8x128xf32> to vector<8x16xf32>
      %c0_27 = arith.constant 0 : index
      %c0_28 = arith.constant 0 : index
      %45 = vector.load %arg12[%c0_27, %c0_28] : memref<8x16xf32, #tpu.memory_space<vmem>>, vector<8x16xf32>
      tpu.vector_store %arg12[%c0_27, %c0_28], %44 {strides = array<i32>} : memref<8x16xf32, #tpu.memory_space<vmem>>, vector<8x16xf32>,
    } else {
    }
    %c1_i32_25 = arith.constant 1 : i32
    %41 = arith.cmpi eq, %arg1, %c1_i32_25 : i32
    %42 = arith.extui %41 : i1 to i32
    %c0_i32_26 = arith.constant 0 : i32
    %43 = arith.cmpi ne, %42, %c0_i32_26 : i32
    scf.if %43 {
      %c0_27 = arith.constant 0 : index
      %c0_28 = arith.constant 0 : index
      %44 = vector.load %arg10[%c0_27, %c0_28] : memref<8x128xf32, #tpu.memory_space<vmem>>, vector<8x128xf32>
      %cst_29 = arith.constant dense<0.000000e+00> : vector<8xf32>
      %45 = vector.multi_reduction <add>, %44, %cst_29 [1] : vector<8x128xf32> to vector<8xf32>
      %46 = vector.shape_cast %45 : vector<8xf32> to vector<8x1xf32>
      %cst_30 = arith.constant 0.00416666688 : f32
      %47 = vector.broadcast %cst_30 : f32 to vector<8x1xf32>
      %48 = arith.mulf %46, %47 : vector<8x1xf32>
      %c0_31 = arith.constant 0 : index
      %c0_32 = arith.constant 0 : index
      %49 = vector.load %arg11[%c0_31, %c0_32] : memref<8x128xf32, #tpu.memory_space<vmem>>, vector<8x128xf32>
      %cst_33 = arith.constant dense<0.000000e+00> : vector<8xf32>
      %50 = vector.multi_reduction <add>, %49, %cst_33 [1] : vector<8x128xf32> to vector<8xf32>
      %51 = vector.shape_cast %50 : vector<8xf32> to vector<8x1xf32>
      %cst_34 = arith.constant 0.00416666688 : f32
      %52 = vector.broadcast %cst_34 : f32 to vector<8x1xf32>
      %53 = arith.mulf %51, %52 : vector<8x1xf32>
      %54 = arith.addf %48, %53 : vector<8x1xf32>
      %c0_35 = arith.constant 0 : index
      %c0_36 = arith.constant 0 : index
      %55 = vector.load %arg5[%c0_35, %c0_36] : memref<8x8xf32, #tpu.memory_space<vmem>>, vector<8x8xf32>
      %56 = vector.broadcast %54 : vector<8x1xf32> to vector<8x8xf32>
      %57 = arith.mulf %55, %56 : vector<8x8xf32>
      %cst_37 = arith.constant dense<0.000000e+00> : vector<8xf32>
      %58 = vector.multi_reduction <add>, %57, %cst_37 [0] : vector<8x8xf32> to vector<8xf32>
      %59 = vector.shape_cast %58 : vector<8xf32> to vector<1x8xf32>
      %c0_38 = arith.constant 0 : index
      %c0_39 = arith.constant 0 : index
      %60 = vector.load %arg6[%c0_38, %c0_39] : memref<1x8xf32, #tpu.memory_space<vmem>>, vector<1x8xf32>
      %61 = arith.addf %59, %60 : vector<1x8xf32>
      %c0_40 = arith.constant 0 : index
      %c0_41 = arith.constant 0 : index
      %c0_42 = arith.constant 0 : index
      %62 = vector.load %arg9[%c0_40, %c0_41, %c0_42] : memref<1x1x8xf32, #tpu.memory_space<vmem>>, vector<1x1x8xf32>
      %63 = vector.shape_cast %62 : vector<1x1x8xf32> to vector<1x8xf32>
      %64 = vector.shape_cast %61 : vector<1x8xf32> to vector<1x1x8xf32>
      tpu.vector_store %arg9[%c0_40, %c0_41, %c0_42], %64 {strides = array<i32>} : memref<1x1x8xf32, #tpu.memory_space<vmem>>, vector<1x1x8xf32>,
    } else {
    }
    return
  }
  func.func @transform_0(%arg0: i32, %arg1: i32) -> (i32, i32, i32) {
    %c0_i32 = arith.constant 0 : i32
    %c0_i32_0 = arith.constant 0 : i32
    return %arg0, %c0_i32, %arg1 : i32, i32, i32
  }
  func.func @transform_1(%arg0: i32, %arg1: i32) -> (i32, i32) {
    %c0_i32 = arith.constant 0 : i32
    %c0_i32_0 = arith.constant 0 : i32
    %c0_i32_1 = arith.constant 0 : i32
    return %c0_i32, %c0_i32_0 : i32, i32
  }
  func.func @transform_2(%arg0: i32, %arg1: i32) -> (i32, i32) {
    %c0_i32 = arith.constant 0 : i32
    %c0_i32_0 = arith.constant 0 : i32
    %c0_i32_1 = arith.constant 0 : i32
    return %c0_i32, %c0_i32_0 : i32, i32
  }
  func.func @transform_3(%arg0: i32, %arg1: i32) -> (i32, i32) {
    %c0_i32 = arith.constant 0 : i32
    %c0_i32_0 = arith.constant 0 : i32
    %c0_i32_1 = arith.constant 0 : i32
    return %c0_i32, %c0_i32_0 : i32, i32
  }
  func.func @transform_4(%arg0: i32, %arg1: i32) -> (i32, i32) {
    %c0_i32 = arith.constant 0 : i32
    %c0_i32_0 = arith.constant 0 : i32
    %c0_i32_1 = arith.constant 0 : i32
    return %c0_i32, %c0_i32_0 : i32, i32
  }
  func.func @transform_5(%arg0: i32, %arg1: i32) -> (i32, i32) {
    %c0_i32 = arith.constant 0 : i32
    %c0_i32_0 = arith.constant 0 : i32
    %c0_i32_1 = arith.constant 0 : i32
    return %c0_i32, %c0_i32_0 : i32, i32
  }
  func.func @transform_6(%arg0: i32, %arg1: i32) -> (i32, i32, i32) {
    %c0_i32 = arith.constant 0 : i32
    %c0_i32_0 = arith.constant 0 : i32
    return %arg0, %c0_i32, %arg1 : i32, i32, i32
  }
  func.func @transform_7(%arg0: i32, %arg1: i32) -> (i32, i32, i32) {
    %c0_i32 = arith.constant 0 : i32
    %c0_i32_0 = arith.constant 0 : i32
    %c0_i32_1 = arith.constant 0 : i32
    return %arg0, %c0_i32, %c0_i32_0 : i32, i32, i32
  }
}

</mosaic_0001>

<llo_original>
// kernel: tpu_custom_call.1
$region0: #{tpu_custom_call.1}
  #allocation0 [shape = 'u32[]', space=smem, size = 0x4, offset = 0x4, fixed_abs, tag = 'smem constant byte address 0x4 - core index']
  #allocation1 [shape = 'u32[72,128]{1,0:T(1,128)}', space=vmem, size = 0x9000, scoped, tag = 'internal scratch']
  #allocation2 [shape = 'f32[8,128]{1,0:T(8,128)}', space=vmem, size = 0x1000, scoped, tag = 'scratch operand']
  #allocation3 [shape = 'f32[8,128]{1,0:T(8,128)}', space=vmem, size = 0x1000, scoped, tag = 'scratch operand']
  #allocation4 [shape = 'f32[8,16]{1,0:T(8,128)}', space=vmem, size = 0x1000, scoped, tag = 'scratch operand']
  %s0 = inlined_call_operand.vmem [shape: f32[2,4,256], index: 0, kind: input, shape index: {}]
  %s1 = inlined_call_operand.vmem [shape: f32[8,4], index: 1, kind: input, shape index: {}]
  %s2 = inlined_call_operand.vmem [shape: f32[8,1], index: 2, kind: input, shape index: {}]
  %s3 = inlined_call_operand.hbm [shape: f32[8,8], index: 3, kind: input, shape index: {}]
  %s4 = inlined_call_operand.vmem [shape: f32[1,8], index: 4, kind: input, shape index: {}]
  %s5 = inlined_call_operand.vmem [shape: f32[1,128], index: 5, kind: input, shape index: {}]
  %s6 = inlined_call_operand.hbm [shape: f32[2,8,256], index: 6, kind: output, shape index: {0}]
  %s7 = inlined_call_operand.hbm [shape: f32[2,1,8], index: 7, kind: output, shape index: {1}]
  %8 = xla_tuple %s6, %s7
  %s9 = sld [smem:[#allocation0]]
  $region85: #{tpu_custom_call.1} parent=0
    _
  %s11 = ssub.s32 1, %s9
  %s12 = scalar_select 0, %s11, %s9
  $region1: #{tpu_custom_call.1} parent=0
    #allocation5 [shape = 'u8[4096]{0}', space=vmem, size = 0x1000, scoped, tag = 'input window, operand 3, single buffered']
    #allocation6 [shape = 's32[2]{0}', space=sflag, size = 0x8, scoped, tag = 'scoped memory for tpu_custom_call.1']
    #allocation7 [shape = 's32[2]{0}', space=sflag, size = 0x8, scoped, tag = 'scoped memory for tpu_custom_call.1']
    #allocation8 [shape = 'u8[8192]{0}', space=vmem, size = 0x2000, scoped, tag = 'output window, operand 0']
    #allocation9 [shape = 'u8[1024]{0}', space=vmem, size = 0x400, scoped, tag = 'output window, operand 1']
    #allocation10 [shape = 's32[2]{0}', space=sflag, size = 0x8, scoped, tag = 'scoped memory for tpu_custom_call.1']
    %13 = vsyncpa [#allocation6], 0
    %14 = vsyncpa [#allocation7], 0
    %s15 = scalar_lea.sflag [#allocation7], 1
    %16 = vsyncpa %s15, 0
    %17 = vsyncpa [#allocation10], 0
    %s18 = scalar_lea.sflag [#allocation10], 1
    %19 = vsyncpa %s18, 0
    loop: start=0, step=1, limit=6
    $region2: #{tpu_custom_call.1} parent=1 // loop_pre_header
      _
    $region3: #{tpu_custom_call.1} parent=1 // loop_header
      %s21 = sphi 0, %s25
      %p22 = scmp.ge.s32.totalorder %s21, 6
      %s28 = sphi 0, %s40
      %s29 = sphi 0, %s36
      %s30 = sphi 0, %s28
      %s31 = sphi 0, %s29
      %s32 = sphi 0, %s30
      %s33 = sphi 0, %s31
      %s45 = sphi 0, %s47
      %s48 = sphi 0, %s45
      %s49 = sphi 0, %s48
      %s65 = sphi 0, %s49
      %s69 = sphi 0, %s69
      %s71 = sphi 0, %s69
      %s72 = sphi 0, %s71
      %s86 = sphi 0, %s72
      %s90 = sphi 0, %s90
      %s92 = sphi 0, %s90
      %s93 = sphi 0, %s92
      %s107 = sphi 0, %s93
      %s111 = sphi 0, %s111
      %s113 = sphi 0, %s111
      %s114 = sphi 0, %s113
      %s128 = sphi 0, %s114
      %s132 = sphi 0, %s132
      %s134 = sphi 0, %s132
      %s135 = sphi 0, %s134
      %s149 = sphi 0, %s135
      %s153 = sphi 0, %s153
      %s155 = sphi 0, %s153
      %s156 = sphi 0, %s155
      %s170 = sphi 0, %s156
      %s178 = sphi 0, %s180
      %s181 = sphi 0, %s178
      %s182 = sphi 0, %s181
      %s198 = sphi 0, %s182
      %s204 = sphi 0, %s206
      %s207 = sphi 0, %s204
      %s208 = sphi 0, %s207
      %s224 = sphi 0, %s208
    $region4: #{tpu_custom_call.1} parent=1 // loop_header_branch
      %24 = sbr.rel (%p22) target = $region8
    $region5: #{tpu_custom_call.1} parent=1 // loop_body
      %s26 = ssub.s32 %s21, 1
      %s27 = ssub.s32 %s21, 2
      %s34 = sadd.s32 1, %s29
      %p35 = scmp.ge.s32.totalorder %s34, 2
      %s36 = scalar_select %p35, 0, %s34
      %s37 = sadd.s32 1, %s28
      %s38 = scalar_select %p35, %s37, %s28
      %p39 = scmp.ge.s32.totalorder %s38, 2
      %s40 = scalar_select %p39, 0, %s38
      %s41 = ssub.s32 %s28, %s40
      %s42 = ssub.s32 %s29, %s36
      %s43 = sor.u32 %s41, %s42
      %p44 = scmp.eq.s32.totalorder %s43, 0
      %s46 = sadd.s32 %s45, 1
      %s47 = scalar_select %p44, %s45, %s46
      %p50 = pneg %p44
      %p51 = scmp.eq.s32.totalorder %s21, 3
      %p52 = por %p50, %p51
      %p53 = scmp.ne.s32.totalorder %s45, %s48
      %p54 = scmp.eq.s32.totalorder %s21, 0
      %p55 = por %p53, %p54
      %p56 = scmp.ne.s32.totalorder %s45, %s48
      %p57 = scmp.eq.s32.totalorder %s26, 3
      %p58 = por %p56, %p57
      %p59 = scmp.ne.s32.totalorder %s48, %s49
      %p60 = scmp.eq.s32.totalorder %s26, 0
      %p61 = por %p59, %p60
      %p62 = scmp.ne.s32.totalorder %s48, %s49
      %p63 = scmp.eq.s32.totalorder %s27, 3
      %p64 = por %p62, %p63
      %p66 = scmp.ne.s32.totalorder %s49, %s65
      %p67 = scmp.eq.s32.totalorder %s27, 0
      %p68 = por %p66, %p67
      %s70 = sadd.s32 %s69, 1
      %p73 = scmp.eq.s32.totalorder %s21, 3
      %p74 = scmp.ne.s32.totalorder %s69, %s71
      %p75 = scmp.eq.s32.totalorder %s21, 0
      %p76 = por %p74, %p75
      %p77 = scmp.ne.s32.totalorder %s69, %s71
      %p78 = scmp.eq.s32.totalorder %s26, 3
      %p79 = por %p77, %p78
      %p80 = scmp.ne.s32.totalorder %s71, %s72
      %p81 = scmp.eq.s32.totalorder %s26, 0
      %p82 = por %p80, %p81
      %p83 = scmp.ne.s32.totalorder %s71, %s72
      %p84 = scmp.eq.s32.totalorder %s27, 3
      %p85 = por %p83, %p84
      %p87 = scmp.ne.s32.totalorder %s72, %s86
      %p88 = scmp.eq.s32.totalorder %s27, 0
      %p89 = por %p87, %p88
      %s91 = sadd.s32 %s90, 1
      %p94 = scmp.eq.s32.totalorder %s21, 3
      %p95 = scmp.ne.s32.totalorder %s90, %s92
      %p96 = scmp.eq.s32.totalorder %s21, 0
      %p97 = por %p95, %p96
      %p98 = scmp.ne.s32.totalorder %s90, %s92
      %p99 = scmp.eq.s32.totalorder %s26, 3
      %p100 = por %p98, %p99
      %p101 = scmp.ne.s32.totalorder %s92, %s93
      %p102 = scmp.eq.s32.totalorder %s26, 0
      %p103 = por %p101, %p102
      %p104 = scmp.ne.s32.totalorder %s92, %s93
      %p105 = scmp.eq.s32.totalorder %s27, 3
      %p106 = por %p104, %p105
      %p108 = scmp.ne.s32.totalorder %s93, %s107
      %p109 = scmp.eq.s32.totalorder %s27, 0
      %p110 = por %p108, %p109
      %s112 = sadd.s32 %s111, 1
      %p115 = scmp.eq.s32.totalorder %s21, 3
      %p116 = scmp.ne.s32.totalorder %s111, %s113
      %p117 = scmp.eq.s32.totalorder %s21, 0
      %p118 = por %p116, %p117
      %p119 = scmp.ne.s32.totalorder %s111, %s113
      %p120 = scmp.eq.s32.totalorder %s26, 3
      %p121 = por %p119, %p120
      %p122 = scmp.ne.s32.totalorder %s113, %s114
      %p123 = scmp.eq.s32.totalorder %s26, 0
      %p124 = por %p122, %p123
      %p125 = scmp.ne.s32.totalorder %s113, %s114
      %p126 = scmp.eq.s32.totalorder %s27, 3
      %p127 = por %p125, %p126
      %p129 = scmp.ne.s32.totalorder %s114, %s128
      %p130 = scmp.eq.s32.totalorder %s27, 0
      %p131 = por %p129, %p130
      %s133 = sadd.s32 %s132, 1
      %p136 = scmp.eq.s32.totalorder %s21, 3
      %p137 = scmp.ne.s32.totalorder %s132, %s134
      %p138 = scmp.eq.s32.totalorder %s21, 0
      %p139 = por %p137, %p138
      %p140 = scmp.ne.s32.totalorder %s132, %s134
      %p141 = scmp.eq.s32.totalorder %s26, 3
      %p142 = por %p140, %p141
      %p143 = scmp.ne.s32.totalorder %s134, %s135
      %p144 = scmp.eq.s32.totalorder %s26, 0
      %p145 = por %p143, %p144
      %p146 = scmp.ne.s32.totalorder %s134, %s135
      %p147 = scmp.eq.s32.totalorder %s27, 3
      %p148 = por %p146, %p147
      %p150 = scmp.ne.s32.totalorder %s135, %s149
      %p151 = scmp.eq.s32.totalorder %s27, 0
      %p152 = por %p150, %p151
      %s154 = sadd.s32 %s153, 1
      %p157 = scmp.eq.s32.totalorder %s21, 3
      %p158 = scmp.ne.s32.totalorder %s153, %s155
      %p159 = scmp.eq.s32.totalorder %s21, 0
      %p160 = por %p158, %p159
      %p161 = scmp.ne.s32.totalorder %s153, %s155
      %p162 = scmp.eq.s32.totalorder %s26, 3
      %p163 = por %p161, %p162
      %p164 = scmp.ne.s32.totalorder %s155, %s156
      %p165 = scmp.eq.s32.totalorder %s26, 0
      %p166 = por %p164, %p165
      %p167 = scmp.ne.s32.totalorder %s155, %s156
      %p168 = scmp.eq.s32.totalorder %s27, 3
      %p169 = por %p167, %p168
      %p171 = scmp.ne.s32.totalorder %s156, %s170
      %p172 = scmp.eq.s32.totalorder %s27, 0
      %p173 = por %p171, %p172
      %s174 = ssub.s32 %s28, %s40
      %s175 = ssub.s32 %s29, %s36
      %s176 = sor.u32 %s174, %s175
      %p177 = scmp.eq.s32.totalorder %s176, 0
      %s179 = sadd.s32 %s178, 1
      %s180 = scalar_select %p177, %s178, %s179
      %p183 = pneg %p177
      %p184 = scmp.eq.s32.totalorder %s21, 3
      %p185 = por %p183, %p184
      %p186 = scmp.ne.s32.totalorder %s178, %s181
      %p187 = scmp.eq.s32.totalorder %s21, 0
      %p188 = por %p186, %p187
      %p189 = scmp.ne.s32.totalorder %s178, %s181
      %p190 = scmp.eq.s32.totalorder %s26, 3
      %p191 = por %p189, %p190
      %p192 = scmp.ne.s32.totalorder %s181, %s182
      %p193 = scmp.eq.s32.totalorder %s26, 0
      %p194 = por %p192, %p193
      %p195 = scmp.ne.s32.totalorder %s181, %s182
      %p196 = scmp.eq.s32.totalorder %s27, 3
      %p197 = por %p195, %p196
      %p199 = scmp.ne.s32.totalorder %s182, %s198
      %p200 = scmp.eq.s32.totalorder %s27, 0
      %p201 = por %p199, %p200
      %s202 = ssub.s32 %s28, %s40
      %p203 = scmp.eq.s32.totalorder %s202, 0
      %s205 = sadd.s32 %s204, 1
      %s206 = scalar_select %p203, %s204, %s205
      %p209 = pneg %p203
      %p210 = scmp.eq.s32.totalorder %s21, 3
      %p211 = por %p209, %p210
      %p212 = scmp.ne.s32.totalorder %s204, %s207
      %p213 = scmp.eq.s32.totalorder %s21, 0
      %p214 = por %p212, %p213
      %p215 = scmp.ne.s32.totalorder %s204, %s207
      %p216 = scmp.eq.s32.totalorder %s26, 3
      %p217 = por %p215, %p216
      %p218 = scmp.ne.s32.totalorder %s207, %s208
      %p219 = scmp.eq.s32.totalorder %s26, 0
      %p220 = por %p218, %p219
      %p221 = scmp.ne.s32.totalorder %s207, %s208
      %p222 = scmp.eq.s32.totalorder %s27, 3
      %p223 = por %p221, %p222
      %p225 = scmp.ne.s32.totalorder %s208, %s224
      %p226 = scmp.eq.s32.totalorder %s27, 0
      %p227 = por %p225, %p226
      %p228 = scmp.le.s32.totalorder 1, %s21
      %p229 = scmp.lt.s32.totalorder %s21, 5
      %p230 = pnand %p228, %p229
      %p231 = pneg %p230
      // Predicated region
      $region9: #{tpu_custom_call.1} parent=5 // pred_check
        _
      $region10: #{tpu_custom_call.1} parent=5 // pred_check_branch
        %233 = sbr.rel (%p230) target = $region12
      $region11: #{tpu_custom_call.1} parent=5 // pred_region
        %s234 = ssub.s32 %s21, 1
        // Predicated region
        $region13: #{tpu_custom_call.1} parent=11 // pred_check
          %p235 = pneg %p82
        $region14: #{tpu_custom_call.1} parent=11 // pred_check_branch
          %237 = sbr.rel (%p235) target = $region16
        $region15: #{tpu_custom_call.1} parent=11 // pred_region
          _
        $region16: #{tpu_custom_call.1} parent=11 // pred_fallthru
          _
        // Predicated region
        $region17: #{tpu_custom_call.1} parent=11 // pred_check
          %p238 = pneg %p103
        $region18: #{tpu_custom_call.1} parent=11 // pred_check_branch
          %240 = sbr.rel (%p238) target = $region20
        $region19: #{tpu_custom_call.1} parent=11 // pred_region
          _
        $region20: #{tpu_custom_call.1} parent=11 // pred_fallthru
          _
        // Predicated region
        $region21: #{tpu_custom_call.1} parent=11 // pred_check
          %p241 = pneg %p124
        $region22: #{tpu_custom_call.1} parent=11 // pred_check_branch
          %243 = sbr.rel (%p241) target = $region24
        $region23: #{tpu_custom_call.1} parent=11 // pred_region
          %245 = vsyncadd [#allocation6], 0
          %s247 = sshll.u32 %s3, 4
          %s248 = int_to_ptr.hbm [resolvable:$true] %s247
          %s249 = sshll.u32 [#allocation5], 4
          %s250 = int_to_ptr.vmem [resolvable:$true] %s249
          %252 = dma.hbm_to_vmem [thread:$0]  %s248, 128, %s250, [#allocation6]
        $region24: #{tpu_custom_call.1} parent=11 // pred_fallthru
          _
        // Predicated region
        $region25: #{tpu_custom_call.1} parent=11 // pred_check
          %p253 = pneg %p145
        $region26: #{tpu_custom_call.1} parent=11 // pred_check_branch
          %255 = sbr.rel (%p253) target = $region28
        $region27: #{tpu_custom_call.1} parent=11 // pred_region
          _
        $region28: #{tpu_custom_call.1} parent=11 // pred_fallthru
          _
        // Predicated region
        $region29: #{tpu_custom_call.1} parent=11 // pred_check
          %p256 = pneg %p166
        $region30: #{tpu_custom_call.1} parent=11 // pred_check_branch
          %258 = sbr.rel (%p256) target = $region32
        $region31: #{tpu_custom_call.1} parent=11 // pred_region
          _
        $region32: #{tpu_custom_call.1} parent=11 // pred_fallthru
          _
      $region12: #{tpu_custom_call.1} parent=5 // pred_fallthru
        _
      %p259 = scmp.lt.s32.totalorder %s21, 4
      // Predicated region
      $region33: #{tpu_custom_call.1} parent=5 // pred_check
        %p260 = pneg %p259
      $region34: #{tpu_custom_call.1} parent=5 // pred_check_branch
        %262 = sbr.rel (%p260) target = $region36
      $region35: #{tpu_custom_call.1} parent=5 // pred_region
        // Predicated region
        $region37: #{tpu_custom_call.1} parent=35 // pred_check
          %p263 = pneg %p55
        $region38: #{tpu_custom_call.1} parent=35 // pred_check_branch
          %265 = sbr.rel (%p263) target = $region40
        $region39: #{tpu_custom_call.1} parent=35 // pred_region
          %p266 = scmp.lt.s32.totalorder %s28, 1
          %s267 = scalar_select %p266, %s28, 1
          %p268 = scmp.lt.s32.totalorder %s29, 1
          %s269 = scalar_select %p268, %s29, 1
          %s270 = smul.addr %s267, 2
          %s271 = sadd.s32 %s269, %s270
          %s272 = smul.addr %s271, 4
          %s273 = scalar_lea.vmem %s0, %s272
        $region40: #{tpu_custom_call.1} parent=35 // pred_fallthru
          _
      $region36: #{tpu_custom_call.1} parent=5 // pred_fallthru
        _
      %p274 = scmp.le.s32.totalorder 1, %s21
      %p275 = scmp.lt.s32.totalorder %s21, 5
      %p276 = pnand %p274, %p275
      %p277 = pneg %p276
      // Predicated region
      $region41: #{tpu_custom_call.1} parent=5 // pred_check
        _
      $region42: #{tpu_custom_call.1} parent=5 // pred_check_branch
        %279 = sbr.rel (%p276) target = $region44
      $region43: #{tpu_custom_call.1} parent=5 // pred_region
        %s280 = ssub.s32 %s21, 1
        // Predicated region
        $region45: #{tpu_custom_call.1} parent=43 // pred_check
          %p281 = pneg %p124
        $region46: #{tpu_custom_call.1} parent=43 // pred_check_branch
          %283 = sbr.rel (%p281) target = $region48
        $region47: #{tpu_custom_call.1} parent=43 // pred_region
          %285 = dma.done [#allocation6], 128
        $region48: #{tpu_custom_call.1} parent=43 // pred_fallthru
          _
        %p286 = scmp.lt.s32.totalorder %s30, 1
        %s287 = scalar_select %p286, %s30, 1
        %p288 = scmp.lt.s32.totalorder %s31, 1
        %s289 = scalar_select %p288, %s31, 1
        %s290 = smul.addr %s287, 2
        %s291 = sadd.s32 %s289, %s290
        %s292 = smul.addr %s291, 4
        %s293 = scalar_lea.vmem %s0, %s292
        %p294 = pneg %p61
        %p295 = pneg %p58
        %p296 = pneg %p82
        %p297 = pneg %p79
        %p298 = pneg %p103
        %p299 = pneg %p100
        %p300 = pneg %p124
        %p301 = pneg %p121
        %p302 = pneg %p145
        %p303 = pneg %p142
        %p304 = pneg %p166
        %p305 = pneg %p163
        %p306 = pneg %p194
        %p307 = pneg %p191
        %s308 = sand.u32 %s181, 1
        %s309 = scalar_lea.sflag [#allocation7], %s308
        %s310 = sand.u32 %s181, 1
        %s311 = smul.addr %s310, 8
        %s312 = scalar_lea.vmem [#allocation8], %s311
        %p313 = pneg %p220
        %p314 = pneg %p217
        %s315 = sand.u32 %s207, 1
        %s316 = scalar_lea.sflag [#allocation10], %s315
        %s317 = sand.u32 %s207, 1
        %s318 = scalar_lea.vmem [#allocation9], %s317
        %p319 = scmp.lt.s32.totalorder %s30, 1
        %s320 = scalar_select %p319, %s30, 1
        %p321 = scmp.lt.s32.totalorder %s31, 1
        %s322 = scalar_select %p321, %s31, 1
        %s323 = smul.addr %s320, 2
        %s324 = sadd.s32 %s322, %s323
        %s325 = smul.addr %s324, 4
        %s326 = scalar_lea.vmem %s0, %s325
        %v327 = vld [vmem:[%s326] sm:$0xf]
        %v328 = vld [vmem:[%s1] sm:$0xff]
        %v329 = vld [vmem:[%s2] sm:$0xff]
        %331 = vset.pattern.permute.xlu0 0
        %332 = vperm.xlu0 %331, %v329
        %v333 = vpop.permute.xlu0 %332
        %vm335 = vcmask 31744
        %v337 = vsel %vm335, %v328, 0
        %vm339 = vcmask 1043456
        %v341 = vsel %vm339, %v327, 0
        %343 = vmatpush.msra.mxu0 0.0
        %344 = vmatpush.msra.mxu0 0.0
        %345 = vmatpush.msra.mxu0 0.0
        %346 = vmatpush.msra.mxu0 0.0
        %347 = vmatpush.msra.mxu0 0.0
        %348 = vmatpush.msra.mxu0 0.0
        %349 = vmatpush.msra.mxu0 0.0
        %350 = vmatpush.msra.mxu0 0.0
        %351 = vmatpush.msra.mxu0 0.0
        %352 = vmatpush.msra.mxu0 0.0
        %353 = vmatpush.msra.mxu0 0.0
        %354 = vmatpush.msra.mxu0 0.0
        %355 = vmatpush.msra.mxu0 0.0
        %356 = vmatpush.msra.mxu0 0.0
        %357 = vmatpush.msra.mxu0 0.0
        %358 = vmatpush.msra.mxu0 %v341
        %359 = vmatmul.f32.gmra.mxu0 %v337
        %v360 = vpop.f32.mrf.mxu0
        %v361 = vadd.f32 %v333, %v360
        %362 = vdwg.mxu0
        %363 = vst [vmem:[%s312] sm:$0xff] %v361
        %p364 = scmp.eq.s32.totalorder %s31, 0
        // Predicated region
        $region49: #{tpu_custom_call.1} parent=43 // pred_check
          %p365 = pneg %p364
        $region50: #{tpu_custom_call.1} parent=43 // pred_check_branch
          %367 = sbr.rel (%p365) target = $region52
        $region51: #{tpu_custom_call.1} parent=43 // pred_region
          %368 = vst [vmem:[#allocation2] sm:$0xff] 0.0
          %369 = vst [vmem:[#allocation3] sm:$0xff] 0.0
        $region52: #{tpu_custom_call.1} parent=43 // pred_fallthru
          _
        %p370 = scmp.gt.s32.totalorder %s31, 0
        // Predicated region
        $region53: #{tpu_custom_call.1} parent=43 // pred_check
          %p371 = pneg %p370
        $region54: #{tpu_custom_call.1} parent=43 // pred_check_branch
          %373 = sbr.rel (%p371) target = $region56
        $region55: #{tpu_custom_call.1} parent=43 // pred_region
          %v374 = vld [vmem:[#allocation4] sm:$0xff]
          %v375 = vsub.f32 %v361, %v374
          %v376 = vmul.f32 %v375, %v375
          %v377 = vld [vmem:[#allocation2] sm:$0xff]
          %vm378 = vcmask 130048
          %v379 = vsel %vm378, %v376, 0.0
          %380 = vadd.xlane.f32.xlu0 %v379
          %v381 = vpop.xlane.xlu0 %380
          %v382 = vadd.f32 %v377, %v381
          %vm383 = vcmask 7168
          %384 = vst.msk [vmem:[#allocation2] sm:$0xff] %vm383, %v382
        $region56: #{tpu_custom_call.1} parent=43 // pred_fallthru
          _
        %386 = vrot.lane.b32.xlu0 %v361, 16
        %v387 = vpop.permute.xlu0 %386
        %v389 = vsub.f32 %v361, %v387
        %v390 = vmul.f32 %v389, %v389
        %v391 = vld [vmem:[#allocation2] sm:$0xff]
        %393 = vrot.lane.b32.xlu0 %v390, 112
        %v394 = vpop.permute.xlu0 %393
        %vm396 = vcmask 916480
        %v397 = vsel %vm396, %v394, 0.0
        %398 = vadd.xlane.f32.xlu0 %v397
        %v399 = vpop.xlane.xlu0 %398
        %v400 = vadd.f32 %v391, %v399
        %vm401 = vcmask 7168
        %402 = vst.msk [vmem:[#allocation2] sm:$0xff] %vm401, %v400
        %403 = vrot.lane.b32.xlu0 %v361, 1
        %v404 = vpop.permute.xlu0 %403
        %v406 = vsub.f32 %v361, %v404
        %v407 = vld [vmem:[%s5] sm:$0x1]
        %v408 = vmul.f32 %v406, %v406
        %v410 = vperm.slane %v407, 0
        %411 = vrot.lane.b32.xlu0 %v410, 1
        %v412 = vpop.permute.xlu0 %411
        %v414 = vmul.f32 %v408, %v412
        %v415 = vld [vmem:[#allocation3] sm:$0xff]
        %417 = vrot.lane.b32.xlu0 %v414, 127
        %v418 = vpop.permute.xlu0 %417
        %vm420 = vcmask 1039360
        %v421 = vsel %vm420, %v418, 0.0
        %422 = vadd.xlane.f32.xlu0 %v421
        %v423 = vpop.xlane.xlu0 %422
        %v424 = vadd.f32 %v415, %v423
        %425 = vst.msk [vmem:[#allocation3] sm:$0xff] %vm401, %v424
        %p426 = scmp.lt.s32.totalorder %s31, 1
        // Predicated region
        $region57: #{tpu_custom_call.1} parent=43 // pred_check
          %p427 = pneg %p426
        $region58: #{tpu_custom_call.1} parent=43 // pred_check_branch
          %429 = sbr.rel (%p427) target = $region60
        $region59: #{tpu_custom_call.1} parent=43 // pred_region
          %vm430 = vcmask 130048
          %431 = vst.msk [vmem:[#allocation4] sm:$0xff] %vm430, %v387
        $region60: #{tpu_custom_call.1} parent=43 // pred_fallthru
          _
        %p432 = scmp.eq.s32.totalorder %s31, 1
        // Predicated region
        $region61: #{tpu_custom_call.1} parent=43 // pred_check
          %p433 = pneg %p432
        $region62: #{tpu_custom_call.1} parent=43 // pred_check_branch
          %435 = sbr.rel (%p433) target = $region64
        $region63: #{tpu_custom_call.1} parent=43 // pred_region
          %v436 = vld [vmem:[#allocation2] sm:$0xff]
          %437 = vadd.xlane.f32.xlu0 %v436
          %v438 = vpop.xlane.xlu0 %437
          %v439 = vmul.f32 %v438, 0.004166667
          %v440 = vld [vmem:[#allocation3] sm:$0xff]
          %441 = vadd.xlane.f32.xlu0 %v440
          %v442 = vpop.xlane.xlu0 %441
          %v443 = vmul.f32 %v442, 0.004166667
          %v444 = vadd.f32 %v439, %v443
          %v445 = vld [vmem:[#allocation5] sm:$0xff]
          %v446 = vmul.f32 %v445, %v444
          %vm447 = vcmask 64512
          %v448 = vsel %vm447, %v446, 0.0
          %v449 = vrot.slane %v448, 4
          %v450 = vadd.f32 %v448, %v449
          %v451 = vrot.slane %v450, 2
          %v452 = vadd.f32 %v450, %v451
          %v453 = vrot.slane %v452, 1
          %v454 = vadd.f32 %v452, %v453
          %v455 = vld [vmem:[%s4] sm:$0x1]
          %v456 = vadd.f32 %v454, %v455
          %vm457 = vcmask 57344
          %458 = vst.msk [vmem:[%s318] sm:$0x1] %vm457, %v456
        $region64: #{tpu_custom_call.1} parent=43 // pred_fallthru
          _
        %s459 = sand.u32 %s181, 1
        %s460 = scalar_lea.sflag [#allocation7], %s459
        %s461 = sand.u32 %s181, 1
        %s462 = smul.addr %s461, 8
        %s463 = scalar_lea.vmem [#allocation8], %s462
        %s464 = sand.u32 %s207, 1
        %s465 = scalar_lea.sflag [#allocation10], %s464
        %s466 = sand.u32 %s207, 1
        %s467 = scalar_lea.vmem [#allocation9], %s466
        // Predicated region
        $region65: #{tpu_custom_call.1} parent=43 // pred_check
          %p468 = pneg %p191
        $region66: #{tpu_custom_call.1} parent=43 // pred_check_branch
          %470 = sbr.rel (%p468) target = $region68
        $region67: #{tpu_custom_call.1} parent=43 // pred_region
          %472 = vsyncadd %s460, 0
          %s473 = smul.addr %s30, 2
          %s474 = sadd.s32 %s31, %s473
          %s475 = smul.addr %s474, 8
          %s476 = scalar_lea.hbm %s6, %s475
          %s478 = sshll.u32 %s463, 4
          %s479 = int_to_ptr.vmem [resolvable:$true] %s478
          %s480 = sshll.u32 %s476, 4
          %s481 = int_to_ptr.hbm [resolvable:$true] %s480
          %483 = dma.vmem_to_hbm [thread:$0]  %s479, 128, %s481, %s460
        $region68: #{tpu_custom_call.1} parent=43 // pred_fallthru
          _
        // Predicated region
        $region69: #{tpu_custom_call.1} parent=43 // pred_check
          %p484 = pneg %p217
        $region70: #{tpu_custom_call.1} parent=43 // pred_check_branch
          %486 = sbr.rel (%p484) target = $region72
        $region71: #{tpu_custom_call.1} parent=43 // pred_region
          %488 = vsyncadd %s465, 0
          %s489 = scalar_lea.hbm %s7, %s30
          %s491 = sshll.u32 %s467, 4
          %s492 = int_to_ptr.vmem [resolvable:$true] %s491
          %s493 = sshll.u32 %s489, 4
          %s494 = int_to_ptr.hbm [resolvable:$true] %s493
          %496 = dma.vmem_to_hbm [thread:$0]  %s492, 16, %s494, %s465
        $region72: #{tpu_custom_call.1} parent=43 // pred_fallthru
          _
      $region44: #{tpu_custom_call.1} parent=5 // pred_fallthru
        _
      %p497 = scmp.le.s32.totalorder 2, %s21
      // Predicated region
      $region73: #{tpu_custom_call.1} parent=5 // pred_check
        %p498 = pneg %p497
      $region74: #{tpu_custom_call.1} parent=5 // pred_check_branch
        %500 = sbr.rel (%p498) target = $region76
      $region75: #{tpu_custom_call.1} parent=5 // pred_region
        %s501 = ssub.s32 %s21, 2
        // Predicated region
        $region77: #{tpu_custom_call.1} parent=75 // pred_check
          %p502 = pneg %p197
        $region78: #{tpu_custom_call.1} parent=75 // pred_check_branch
          %504 = sbr.rel (%p502) target = $region80
        $region79: #{tpu_custom_call.1} parent=75 // pred_region
          %s505 = sand.u32 %s182, 1
          %s506 = scalar_lea.sflag [#allocation7], %s505
          %s507 = sand.u32 %s182, 1
          %s508 = smul.addr %s507, 8
          %s509 = scalar_lea.vmem [#allocation8], %s508
          %511 = dma.done %s506, 128
        $region80: #{tpu_custom_call.1} parent=75 // pred_fallthru
          _
        // Predicated region
        $region81: #{tpu_custom_call.1} parent=75 // pred_check
          %p512 = pneg %p223
        $region82: #{tpu_custom_call.1} parent=75 // pred_check_branch
          %514 = sbr.rel (%p512) target = $region84
        $region83: #{tpu_custom_call.1} parent=75 // pred_region
          %s515 = sand.u32 %s208, 1
          %s516 = scalar_lea.sflag [#allocation10], %s515
          %s517 = sand.u32 %s208, 1
          %s518 = scalar_lea.vmem [#allocation9], %s517
          %520 = dma.done %s516, 16
        $region84: #{tpu_custom_call.1} parent=75 // pred_fallthru
          _
      $region76: #{tpu_custom_call.1} parent=5 // pred_fallthru
        _
    $region6: #{tpu_custom_call.1} parent=1 // loop_footer
      %s25 = sadd.s32 1, %s21
    $region7: #{tpu_custom_call.1} parent=1 // loop_footer_branch
      %20 = sbr.rel target = $region3
    $region8: #{tpu_custom_call.1} parent=1 // loop_exit
      _
    %521 = vsyncpa [#allocation6], 1
    %s522 = scalar_lea.sflag [#allocation6], 1
    %523 = vsyncpa %s522, 1
    %524 = vsyncpa [#allocation7], 1
    %s525 = scalar_lea.sflag [#allocation7], 1
    %526 = vsyncpa %s525, 1
    %527 = vsyncpa [#allocation10], 1
    %s528 = scalar_lea.sflag [#allocation10], 1
    %529 = vsyncpa %s528, 1

</llo_original>
